<compile_context>
chip_gen: v7x
topology: tpu7x:2x2x1
jax: 0.10.0
libtpu: 0.0.40
codegen_flags: <defaults>
</compile_context>

<pallas_src>
import functools

import jax
import jax.numpy as jnp
from jax.experimental import pallas as pl
from jax.experimental.pallas import tpu as pltpu


def _simple_model_kernel(param_ref, update_ref, out_ref, *, activation):
    """Elementwise hot path: out = param + update  [+ activation + 1e-8]."""
    out = param_ref[...] + update_ref[...]
    if activation is not None:
        # Keep everything in the output dtype (no silent f32 promotion for
        # bf16/f16 fields).  Note: 1e-8 underflows to 0 in bf16, matching the
        # value PyTorch would store after a bf16 cast.
        out = activation(out) + jnp.asarray(1e-8, out_ref.dtype)
    out_ref[...] = out.astype(out_ref.dtype)


_SINGLE_BLOCK_MAX_BYTES = 256 * 1024     # per-array: below this, no grid at all
_TILE_TARGET_BYTES = 1 * 1024 * 1024     # ~1 MiB tiles; roofline is flat above this
_MIN_GRID_STEPS = 8                      # guarantee pipelining + v7x 2-TC sharding
_LANE = 128


def simple_model_forward(param, update, *, activation=None, donate_param=False):
    """Pallas wrapper reproducing SimpleModel.forward()."""
    assert param.shape == update.shape and param.dtype == update.dtype
    dtype = param.dtype
    itemsize = jnp.dtype(dtype).itemsize
    sublane = (8 * 4) // itemsize        # 8 (f32), 16 (bf16/f16), 32 (int8/fp8)
    orig_shape = param.shape
    n = param.size
    total_bytes = n * itemsize

    kernel = functools.partial(_simple_model_kernel, activation=activation)
    io_aliases = {0: 0} if donate_param else {}

    # --- tiny fields: one whole-array block, no grid -------------------------
    if total_bytes <= _SINGLE_BLOCK_MAX_BYTES:
        return pl.pallas_call(
            kernel,
            out_shape=jax.ShapeDtypeStruct(orig_shape, dtype),
            input_output_aliases=io_aliases,
            compiler_params=pltpu.CompilerParams(
                vmem_limit_bytes=32 * 1024 * 1024),
        )(param, update)

    # --- larger fields: lane-dense 2-D slab + pipelined row-tile grid --------
    p = param.reshape(-1)
    u = update.reshape(-1)
    pad = (-n) % _LANE
    if pad:
        # TODO(synk): padding costs one extra wrapper-side copy for shapes
        # whose element count is not a multiple of 128.
        p = jnp.pad(p, (0, pad))
        u = jnp.pad(u, (0, pad))
    n_pad = n + pad

    # Widest lane-dense column width that divides the slab (unmasked vst).
    cols = _LANE
    for c in (1024, 512, 256):
        if n_pad % c == 0:
            cols = c
            break
    rows = n_pad // cols
    p = p.reshape(rows, cols)
    u = u.reshape(rows, cols)

    # ~1 MiB row tiles, dtype-aware sublane alignment, and a cap so the grid
    # has >= _MIN_GRID_STEPS steps (full DMA/compute overlap; both v7x cores).
    row_bytes = cols * itemsize
    tile_rows = max(_TILE_TARGET_BYTES // row_bytes, sublane)
    tile_rows = (tile_rows // sublane) * sublane
    cap = max(sublane, (rows // _MIN_GRID_STEPS) // sublane * sublane)
    tile_rows = max(sublane, min(tile_rows, cap))
    tile_rows = min(tile_rows, rows)

    grid = (pl.cdiv(rows, tile_rows),)
    spec = pl.BlockSpec((tile_rows, cols), lambda i: (i, 0))

    out2d = pl.pallas_call(
        kernel,
        out_shape=jax.ShapeDtypeStruct((rows, cols), dtype),
        grid=grid,
        in_specs=[spec, spec],
        out_specs=spec,
        input_output_aliases=io_aliases,
        compiler_params=pltpu.CompilerParams(
            dimension_semantics=("parallel",),   # shards steps across v7x's 2 TCs
            vmem_limit_bytes=32 * 1024 * 1024,
        ),
    )(p, u)

    out = out2d.reshape(-1)
    if pad:
        out = out[:n]
    return out.reshape(orig_shape)


if __name__ == "__main__":
    key = jax.random.PRNGKey(0)
    keys = jax.random.split(key, 8)

    def ref_fwd(p, u, activation=None):
        out = p + u
        if activation is not None:
            return activation(out) + jnp.asarray(1e-8, out.dtype)
        return out

    relu = lambda x: jnp.maximum(x, 0)

    # 1) Tiny field -> single whole-array block path.
    p1 = jax.random.normal(keys[0], (16, 128), jnp.float32)
    u1 = jax.random.uniform(keys[1], (16, 128), jnp.float32) * 0.1
    o1 = jax.block_until_ready(simple_model_forward(p1, u1))
    o1a = jax.block_until_ready(simple_model_forward(p1, u1, activation=relu))
    assert jnp.allclose(o1, ref_fwd(p1, u1), atol=1e-6)
    assert jnp.allclose(o1a, ref_fwd(p1, u1, relu), atol=1e-6)

    # 2) Mid-size field -> tiled path with >= 8 pipelined grid steps.
    p2 = jax.random.normal(keys[2], (512, 512), jnp.float32)
    u2 = jax.random.uniform(keys[3], (512, 512), jnp.float32) * 0.1
    o2 = jax.block_until_ready(simple_model_forward(p2, u2))
    o2a = jax.block_until_ready(simple_model_forward(p2, u2, activation=relu))
    assert jnp.allclose(o2, ref_fwd(p2, u2), atol=1e-6)
    assert jnp.allclose(o2a, ref_fwd(p2, u2, relu), atol=1e-6)

    # 3) Odd (non-128-multiple) FEM shape -> wrapper pads to a lane-dense slab.
    p3 = jax.random.normal(keys[4], (250, 333), jnp.float32)
    u3 = jax.random.uniform(keys[5], (250, 333), jnp.float32) * 0.1
    o3 = jax.block_until_ready(simple_model_forward(p3, u3))
    assert jnp.allclose(o3, ref_fwd(p3, u3), atol=1e-6)

    # 4) bf16 field -> dtype-aware sublane alignment (16-row tiles).
    p4 = jax.random.normal(keys[6], (512, 384), jnp.float32).astype(jnp.bfloat16)
    u4 = (jax.random.uniform(keys[7], (512, 384), jnp.float32) * 0.1).astype(jnp.bfloat16)
    o4 = jax.block_until_ready(simple_model_forward(p4, u4))
    assert jnp.allclose(o4.astype(jnp.float32),
                        ref_fwd(p4, u4).astype(jnp.float32), atol=1e-2)

    # 5) Aliased output (in-place "param + update" semantics of the module).
    o5 = jax.block_until_ready(simple_model_forward(p2, u2, donate_param=True))
    assert jnp.allclose(o5, ref_fwd(p2, u2), atol=1e-6)

    print("KERNEL_OK")
</pallas_src>

<mosaic_0001>
module attributes {stable_mosaic.version = 11 : i64} {
  func.func @_simple_model_kernel(%arg0: memref<16x128xf32, #tpu.memory_space<vmem>>, %arg1: memref<16x128xf32, #tpu.memory_space<vmem>>, %arg2: memref<16x128xf32, #tpu.memory_space<vmem>>) attributes {dimension_semantics = [], scalar_prefetch = 0 : i64, scratch_operands = 0 : i64, tpu.core_type = #tpu.core_type<tc>} {
    %c0 = arith.constant 0 : index
    %c0_0 = arith.constant 0 : index
    %0 = vector.load %arg0[%c0, %c0_0] : memref<16x128xf32, #tpu.memory_space<vmem>>, vector<16x128xf32>
    %c0_1 = arith.constant 0 : index
    %c0_2 = arith.constant 0 : index
    %1 = vector.load %arg1[%c0_1, %c0_2] : memref<16x128xf32, #tpu.memory_space<vmem>>, vector<16x128xf32>
    %2 = arith.addf %0, %1 : vector<16x128xf32>
    %c0_3 = arith.constant 0 : index
    %c0_4 = arith.constant 0 : index
    %3 = vector.load %arg2[%c0_3, %c0_4] : memref<16x128xf32, #tpu.memory_space<vmem>>, vector<16x128xf32>
    tpu.vector_store %arg2[%c0_3, %c0_4], %2 {strides = array<i32>} : memref<16x128xf32, #tpu.memory_space<vmem>>, vector<16x128xf32>,
    return
  }
}

</mosaic_0001>

<llo_original>
// kernel: tpu_custom_call.1
$region0: #{tpu_custom_call.1}
  #allocation0 [shape = 'u32[]', space=smem, size = 0x4, offset = 0x4, fixed_abs, tag = 'smem constant byte address 0x4 - core index']
  #allocation1 [shape = 'u32[144,128]{1,0:T(1,128)}', space=vmem, size = 0x12000, scoped, tag = 'internal scratch']
  %s0 = inlined_call_operand.hbm [shape: f32[16,128], index: 0, kind: input, shape index: {}]
  %s1 = inlined_call_operand.hbm [shape: f32[16,128], index: 1, kind: input, shape index: {}]
  %s2 = inlined_call_operand.hbm [shape: f32[16,128], index: 2, kind: output, shape index: {}]
  %s3 = sld [smem:[#allocation0]]
  $region26: #{tpu_custom_call.1} parent=0
    _
  %s5 = ssub.s32 1, %s3
  %s6 = scalar_select 0, %s5, %s3
  $region1: #{tpu_custom_call.1} parent=0
    #allocation2 [shape = 'u8[8192]{0}', space=vmem, size = 0x2000, scoped, tag = 'input window, operand 0, single buffered']
    #allocation3 [shape = 's32[1]{0}', space=sflag, size = 0x4, scoped, tag = 'scoped memory for tpu_custom_call.1']
    #allocation4 [shape = 's32[1]{0}', space=sflag, size = 0x4, scoped, tag = 'scoped memory for tpu_custom_call.1']
    #allocation5 [shape = 'u8[8192]{0}', space=vmem, size = 0x2000, scoped, tag = 'input window, operand 1, single buffered']
    #allocation6 [shape = 's32[1]{0}', space=sflag, size = 0x4, scoped, tag = 'scoped memory for tpu_custom_call.1']
    #allocation7 [shape = 'u8[8192]{0}', space=vmem, size = 0x2000, scoped, tag = 'output window, operand 0, single buffered']
    %7 = vsyncpa [#allocation3], 0
    %8 = vsyncpa [#allocation6], 0
    %9 = vsyncpa [#allocation4], 0
    // Predicated region
    $region2: #{tpu_custom_call.1} parent=1 // pred_check
      _
    $region3: #{tpu_custom_call.1} parent=1 // pred_check_branch
      %11 = sbr.rel (0) target = $region5
    $region4: #{tpu_custom_call.1} parent=1 // pred_region
      %s13 = ssub.s32 256, 256
      %14 = vsyncadd [#allocation3], %s13
      %s15 = sshll.u32 [#allocation2], 4
      %s16 = int_to_ptr.vmem [resolvable:$true] %s15
      %21 = dma.hbm_to_vmem [thread:$0]  %s0, 256, %s16, [#allocation3], 128, 128, 8
    $region5: #{tpu_custom_call.1} parent=1 // pred_fallthru
      _
    // Predicated region
    $region6: #{tpu_custom_call.1} parent=1 // pred_check
      _
    $region7: #{tpu_custom_call.1} parent=1 // pred_check_branch
      %23 = sbr.rel (0) target = $region9
    $region8: #{tpu_custom_call.1} parent=1 // pred_region
      %s25 = ssub.s32 256, 256
      %26 = vsyncadd [#allocation6], %s25
      %s27 = sshll.u32 [#allocation5], 4
      %s28 = int_to_ptr.vmem [resolvable:$true] %s27
      %33 = dma.hbm_to_vmem [thread:$0]  %s1, 256, %s28, [#allocation6], 128, 128, 8
    $region9: #{tpu_custom_call.1} parent=1 // pred_fallthru
      _
    // Predicated region
    $region10: #{tpu_custom_call.1} parent=1 // pred_check
      _
    $region11: #{tpu_custom_call.1} parent=1 // pred_check_branch
      %35 = sbr.rel (0) target = $region13
    $region12: #{tpu_custom_call.1} parent=1 // pred_region
      %36 = dma.done [#allocation3], 256
    $region13: #{tpu_custom_call.1} parent=1 // pred_fallthru
      _
    // Predicated region
    $region14: #{tpu_custom_call.1} parent=1 // pred_check
      _
    $region15: #{tpu_custom_call.1} parent=1 // pred_check_branch
      %38 = sbr.rel (0) target = $region17
    $region16: #{tpu_custom_call.1} parent=1 // pred_region
      %39 = dma.done [#allocation6], 256
    $region17: #{tpu_custom_call.1} parent=1 // pred_fallthru
      _
    %v40 = vld [vmem:[#allocation2] sm:$0xff]
    %v41 = vld [vmem:[#allocation2 + $0x8] sm:$0xff]
    %v42 = vld [vmem:[#allocation5] sm:$0xff]
    %v43 = vld [vmem:[#allocation5 + $0x8] sm:$0xff]
    %v44 = vadd.f32 %v40, %v42
    %v45 = vadd.f32 %v41, %v43
    %46 = vst [vmem:[#allocation7] sm:$0xff] %v44
    %47 = vst [vmem:[#allocation7 + $0x8] sm:$0xff] %v45
    // Predicated region
    $region18: #{tpu_custom_call.1} parent=1 // pred_check
      _
    $region19: #{tpu_custom_call.1} parent=1 // pred_check_branch
      %49 = sbr.rel (0) target = $region21
    $region20: #{tpu_custom_call.1} parent=1 // pred_region
      %s51 = ssub.s32 256, 256
      %52 = vsyncadd [#allocation4], %s51
      %s53 = sshll.u32 [#allocation7], 4
      %s54 = int_to_ptr.vmem [resolvable:$true] %s53
      %59 = dma.vmem_to_hbm [thread:$0]  %s54, 256, %s2, [#allocation4], 128, 128, 8
    $region21: #{tpu_custom_call.1} parent=1 // pred_fallthru
      _
    // Predicated region
    $region22: #{tpu_custom_call.1} parent=1 // pred_check
      _
    $region23: #{tpu_custom_call.1} parent=1 // pred_check_branch
      %61 = sbr.rel (0) target = $region25
    $region24: #{tpu_custom_call.1} parent=1 // pred_region
      %62 = dma.done [#allocation4], 256
    $region25: #{tpu_custom_call.1} parent=1 // pred_fallthru
      _
    %63 = vsyncpa [#allocation3], 1
    %64 = vsyncpa [#allocation6], 1
    %65 = vsyncpa [#allocation4], 1

</llo_original>
